<compile_context>
chip_gen: v7x
topology: tpu7x:2x2x1
jax: 0.10.0
libtpu: 0.0.40
codegen_flags: <defaults>
</compile_context>

<pallas_src>
import jax
import jax.numpy as jnp
from jax.experimental import pallas as pl
from jax.experimental.pallas import tpu as pltpu


# ----------------------------------------------------------------------------
# Pallas kernel: W (OC, K) @ x-tile (K, tl) + bias, reading NCL directly
# ----------------------------------------------------------------------------
def _uppool_pointwise_kernel(x_ref, w_ref, b_ref, o_ref):
    # x_ref: (1, K, tl)   w_ref: (OC, K)   b_ref: (OC, 1)   o_ref: (1, OC, tl)
    # W is tiny (<= a few KiB) and resident; both MXU operands are consumed in their
    # natural (sublane, lane) layout, tl being the only large (lane) axis.
    acc = jnp.dot(w_ref[...], x_ref[0], preferred_element_type=jnp.float32)
    o_ref[0] = (acc + b_ref[...]).astype(o_ref.dtype)


def _choose_l_tile(L, per_lane_bytes, vmem_budget_bytes):
    """Pick the L tile (lane dim): full L when it fits the budget, else the largest
    multiple of 512 whose double-buffered x+out tiles fit `vmem_budget_bytes`."""
    tl_max = max(512, vmem_budget_bytes // per_lane_bytes)
    if L <= tl_max:
        return L                      # full-dim block is always a legal BlockSpec
    return max(512, (tl_max // 512) * 512)


def uppool_conv1x1(x, w, bias, *, out_dtype=None, vmem_budget_bytes=12 * 1024 * 1024):
    """Pointwise conv: x (B, K, L) NCL, w (OC, K), bias (OC,) -> (B, OC, L)."""
    B, K, L = x.shape
    OC, K_w = w.shape
    assert K_w == K
    out_dtype = out_dtype or x.dtype

    in_itemsize = jnp.dtype(x.dtype).itemsize
    out_itemsize = jnp.dtype(out_dtype).itemsize

    # Double-buffered x tile + out tile bytes per lane of tl.
    per_lane = 2 * (K * in_itemsize + OC * out_itemsize)
    tl = _choose_l_tile(L, per_lane, vmem_budget_bytes)

    grid = (B, pl.cdiv(L, tl))        # no padding: last partial block is masked
    bias2d = bias.astype(jnp.float32).reshape(OC, 1)

    # VMEM estimate: streamed tiles + resident W/bias (double-buffered) + slack.
    vmem_est = per_lane * tl + 2 * (OC * K * in_itemsize + OC * 4) + (1 << 20)
    cp_kwargs = dict(dimension_semantics=("parallel", "parallel"))
    if vmem_est > 16 * 1024 * 1024:             # above the 16 MiB scoped default
        cp_kwargs["vmem_limit_bytes"] = min(int(vmem_est), 32 * 1024 * 1024)

    cost = pl.CostEstimate(
        flops=2 * B * OC * K * L,
        bytes_accessed=(B * K * L * in_itemsize + B * OC * L * out_itemsize
                        + OC * K * in_itemsize + OC * 4),
        transcendentals=0,
    )

    y = pl.pallas_call(
        _uppool_pointwise_kernel,
        out_shape=jax.ShapeDtypeStruct((B, OC, L), out_dtype),
        grid_spec=pl.GridSpec(
            grid=grid,
            in_specs=[
                pl.BlockSpec((1, K, tl), lambda b, l: (b, 0, l)),   # x tile, NCL, no transpose
                pl.BlockSpec((OC, K), lambda b, l: (0, 0)),         # W resident in VMEM
                pl.BlockSpec((OC, 1), lambda b, l: (0, 0)),         # bias resident
            ],
            out_specs=pl.BlockSpec((1, OC, tl), lambda b, l: (b, 0, l)),  # lane-dense output
        ),
        compiler_params=pltpu.CompilerParams(**cp_kwargs),
        cost_estimate=cost,
    )(x, w, bias2d)
    return y


# ----------------------------------------------------------------------------
# UpPool forward (wrapper)
# ----------------------------------------------------------------------------
def uppool_forward(x, w_eff, bias, d_output, pool, *, out_dtype=None,
                   vmem_budget_bytes=12 * 1024 * 1024):
    """x: (B, d_input, L) NCL -> (B, d_output, L*pool).

    Computes in x.dtype (bf16 in -> bf16 out by default, halving HBM bytes of both
    the kernel and the interleave pass); MXU accumulation and bias add stay f32.
    """
    B, C_in, L = x.shape
    OC = d_output * pool
    assert w_eff.shape == (OC, C_in)
    out_dtype = out_dtype or x.dtype

    w_c = w_eff.astype(x.dtype)       # W is tiny; cast cost is negligible
    y = uppool_conv1x1(x, w_c, bias, out_dtype=out_dtype,
                       vmem_budget_bytes=vmem_budget_bytes)          # (B, OC, L)

    # rearrange '(h s) l -> h (l s)'  — XLA transpose pass (see TODO at top of file).
    y = y.reshape(B, d_output, pool, L)
    y = jnp.transpose(y, (0, 1, 3, 2)).reshape(B, d_output, L * pool)
    return y


# ----------------------------------------------------------------------------
# Deterministic parameter init (weight-normed Conv1d, kernel_size=1)
# ----------------------------------------------------------------------------
def make_params(key, d_input, d_output, pool):
    OC = d_output * pool
    kv, kg, kb = jax.random.split(key, 3)
    v = jax.random.normal(kv, (OC, d_input), dtype=jnp.float32)
    g = jax.random.uniform(kg, (OC,), dtype=jnp.float32, minval=0.5, maxval=1.5)
    bias = jax.random.normal(kb, (OC,), dtype=jnp.float32) * 0.1
    # effective weight: w = g * v / ||v||  (weight_norm over dim=0)
    v_norm = jnp.sqrt(jnp.sum(v * v, axis=1, keepdims=True))
    w_eff = (g[:, None] / v_norm) * v                                # (OC, C_in)
    return w_eff, bias


def _reference(x_f32, w_f32, bias, d_output, pool):
    B, _, L = x_f32.shape
    conv_out = jnp.einsum("oc,bcl->bol", w_f32, x_f32) + bias[None, :, None]
    ref = conv_out.reshape(B, d_output, pool, L)
    return jnp.transpose(ref, (0, 1, 3, 2)).reshape(B, d_output, L * pool)


if __name__ == "__main__":
    # Small shapes consistent with the module: batch=2, d_input=16, L=64, pool=4, d_output=8
    B, d_input, L = 2, 16, 64
    d_output, pool = 8, 4

    key = jax.random.PRNGKey(0)
    kx, kp = jax.random.split(key)
    x = jax.random.normal(kx, (B, d_input, L), dtype=jnp.float32)    # NCL, like PyTorch Conv1d
    w_eff, bias = make_params(kp, d_input, d_output, pool)

    # --- f32 path -------------------------------------------------------------
    out = uppool_forward(x, w_eff, bias, d_output, pool)
    out = jax.block_until_ready(out)
    assert out.shape == (B, d_output, L * pool)
    ref = _reference(x, w_eff, bias, d_output, pool)
    assert jnp.allclose(out, ref, atol=1e-4, rtol=1e-4), "mismatch vs reference (f32)"

    # --- ragged-L path (L % tl != 0, no pad / no slice): force a small tile ----
    L2 = 640
    x2 = jax.random.normal(jax.random.PRNGKey(1), (B, d_input, L2), dtype=jnp.float32)
    out2 = uppool_forward(x2, w_eff, bias, d_output, pool,
                          vmem_budget_bytes=200 * 1024)              # -> tl = 512, 2 L-tiles
    out2 = jax.block_until_ready(out2)
    ref2 = _reference(x2, w_eff, bias, d_output, pool)
    assert out2.shape == (B, d_output, L2 * pool)
    assert jnp.allclose(out2, ref2, atol=1e-4, rtol=1e-4), "mismatch vs reference (ragged L)"

    # --- bf16 path: x arrives as bf16 (cast belongs to the producer, not here) --
    x_bf16 = x.astype(jnp.bfloat16)
    out_bf16 = uppool_forward(x_bf16, w_eff, bias, d_output, pool)    # bf16 in -> bf16 out
    out_bf16 = jax.block_until_ready(out_bf16)
    assert out_bf16.shape == (B, d_output, L * pool)
    assert out_bf16.dtype == jnp.bfloat16
    # Reference uses the same bf16-rounded inputs; remaining error is the bf16 store.
    ref_bf16 = _reference(x_bf16.astype(jnp.float32),
                          w_eff.astype(jnp.bfloat16).astype(jnp.float32),
                          bias, d_output, pool)
    assert jnp.allclose(out_bf16.astype(jnp.float32), ref_bf16,
                        atol=1e-2, rtol=1e-2), "mismatch vs reference (bf16)"

    print("KERNEL_OK")
</pallas_src>

<mosaic_0001>
module attributes {stable_mosaic.version = 11 : i64} {
  func.func @_uppool_pointwise_kernel(%arg0: i32, %arg1: i32, %arg2: memref<1x16x64xf32, #tpu.memory_space<vmem>>, %arg3: memref<32x16xf32, #tpu.memory_space<vmem>>, %arg4: memref<32x1xf32, #tpu.memory_space<vmem>>, %arg5: memref<1x32x64xf32, #tpu.memory_space<vmem>>) attributes {dimension_semantics = [#tpu.dimension_semantics<parallel>, #tpu.dimension_semantics<parallel>], iteration_bounds = array<i64: 2, 1>, scalar_prefetch = 0 : i64, scratch_operands = 0 : i64, tpu.core_type = #tpu.core_type<tc>, window_params = [{transform_indices = @transform_0, window_bounds = array<i64: 1, 16, 64>}, {pipeline_mode = #tpu.pipeline_mode<synchronous>, transform_indices = @transform_1, window_bounds = array<i64: 32, 16>}, {pipeline_mode = #tpu.pipeline_mode<synchronous>, transform_indices = @transform_2, window_bounds = array<i64: 32, 1>}, {transform_indices = @transform_3, window_bounds = array<i64: 1, 32, 64>}]} {
    %c0 = arith.constant 0 : index
    %c0_0 = arith.constant 0 : index
    %0 = vector.load %arg3[%c0, %c0_0] : memref<32x16xf32, #tpu.memory_space<vmem>>, vector<32x16xf32>
    %c0_1 = arith.constant 0 : index
    %c0_2 = arith.constant 0 : index
    %c0_3 = arith.constant 0 : index
    %1 = vector.load %arg2[%c0_1, %c0_2, %c0_3] : memref<1x16x64xf32, #tpu.memory_space<vmem>>, vector<1x16x64xf32>
    %2 = vector.shape_cast %1 : vector<1x16x64xf32> to vector<16x64xf32>
    %cst = arith.constant dense<0.000000e+00> : vector<32x64xf32>
    %3 = tpu.matmul %0, %2, %cst {dimension_numbers = #tpu.dot_dimension_numbers<[1], [0], [0], [1], [0, 0, 1, 1], [], []>} : vector<32x16xf32>, vector<16x64xf32>, vector<32x64xf32> -> vector<32x64xf32>
    %c0_4 = arith.constant 0 : index
    %c0_5 = arith.constant 0 : index
    %4 = vector.load %arg4[%c0_4, %c0_5] : memref<32x1xf32, #tpu.memory_space<vmem>>, vector<32x1xf32>
    %5 = vector.broadcast %4 : vector<32x1xf32> to vector<32x64xf32>
    %6 = arith.addf %3, %5 : vector<32x64xf32>
    %c0_6 = arith.constant 0 : index
    %c0_7 = arith.constant 0 : index
    %c0_8 = arith.constant 0 : index
    %7 = vector.load %arg5[%c0_6, %c0_7, %c0_8] : memref<1x32x64xf32, #tpu.memory_space<vmem>>, vector<1x32x64xf32>
    %8 = vector.shape_cast %7 : vector<1x32x64xf32> to vector<32x64xf32>
    %9 = vector.shape_cast %6 : vector<32x64xf32> to vector<1x32x64xf32>
    tpu.vector_store %arg5[%c0_6, %c0_7, %c0_8], %9 {strides = array<i32>} : memref<1x32x64xf32, #tpu.memory_space<vmem>>, vector<1x32x64xf32>,
    return
  }
  func.func @transform_0(%arg0: i32, %arg1: i32) -> (i32, i32, i32) {
    %c0_i32 = arith.constant 0 : i32
    %c0_i32_0 = arith.constant 0 : i32
    return %arg0, %c0_i32, %arg1 : i32, i32, i32
  }
  func.func @transform_1(%arg0: i32, %arg1: i32) -> (i32, i32) {
    %c0_i32 = arith.constant 0 : i32
    %c0_i32_0 = arith.constant 0 : i32
    %c0_i32_1 = arith.constant 0 : i32
    return %c0_i32, %c0_i32_0 : i32, i32
  }
  func.func @transform_2(%arg0: i32, %arg1: i32) -> (i32, i32) {
    %c0_i32 = arith.constant 0 : i32
    %c0_i32_0 = arith.constant 0 : i32
    %c0_i32_1 = arith.constant 0 : i32
    return %c0_i32, %c0_i32_0 : i32, i32
  }
  func.func @transform_3(%arg0: i32, %arg1: i32) -> (i32, i32, i32) {
    %c0_i32 = arith.constant 0 : i32
    %c0_i32_0 = arith.constant 0 : i32
    return %arg0, %c0_i32, %arg1 : i32, i32, i32
  }
}

</mosaic_0001>

<llo_original>
// kernel: tpu_custom_call.1
$region0: #{tpu_custom_call.1}
  #allocation0 [shape = 'u32[]', space=smem, size = 0x4, offset = 0x4, fixed_abs, tag = 'smem constant byte address 0x4 - core index']
  #allocation1 [shape = 'u32[144,128]{1,0:T(1,128)}', space=vmem, size = 0x12000, scoped, tag = 'internal scratch']
  %s0 = inlined_call_operand.vmem [shape: f32[2,16,64], index: 0, kind: input, shape index: {}]
  %s1 = inlined_call_operand.vmem [shape: f32[32,16], index: 1, kind: input, shape index: {}]
  %s2 = inlined_call_operand.vmem [shape: f32[32,1], index: 2, kind: input, shape index: {}]
  %s3 = inlined_call_operand.hbm [shape: f32[2,32,64], index: 3, kind: output, shape index: {}]
  %s4 = sld [smem:[#allocation0]]
  $region45: #{tpu_custom_call.1} parent=0
    _
  %s6 = ssub.s32 1, %s4
  %s7 = scalar_select 0, %s6, %s4
  $region1: #{tpu_custom_call.1} parent=0
    #allocation2 [shape = 'u8[32768]{0}', space=vmem, size = 0x8000, scoped, tag = 'output window, operand 0']
    #allocation3 [shape = 's32[2]{0}', space=sflag, size = 0x8, scoped, tag = 'scoped memory for tpu_custom_call.1']
    %8 = vsyncpa [#allocation3], 0
    %s9 = scalar_lea.sflag [#allocation3], 1
    %10 = vsyncpa %s9, 0
    loop: start=0, step=1, limit=4
    $region2: #{tpu_custom_call.1} parent=1 // loop_pre_header
      _
    $region3: #{tpu_custom_call.1} parent=1 // loop_header
      %s12 = sphi 0, %s16
      %p13 = scmp.ge.s32.totalorder %s12, 4
      %s19 = sphi 0, %s31
      %s20 = sphi 0, %s27
      %s21 = sphi 0, %s19
      %s22 = sphi 0, %s20
      %s23 = sphi 0, %s21
      %s24 = sphi 0, %s22
      %s36 = sphi 0, %s38
      %s39 = sphi 0, %s36
      %s40 = sphi 0, %s39
      %s56 = sphi 0, %s40
      %s60 = sphi 0, %s60
      %s62 = sphi 0, %s60
      %s63 = sphi 0, %s62
      %s77 = sphi 0, %s63
      %s81 = sphi 0, %s81
      %s83 = sphi 0, %s81
      %s84 = sphi 0, %s83
      %s98 = sphi 0, %s84
      %s106 = sphi 0, %s108
      %s109 = sphi 0, %s106
      %s110 = sphi 0, %s109
      %s126 = sphi 0, %s110
    $region4: #{tpu_custom_call.1} parent=1 // loop_header_branch
      %15 = sbr.rel (%p13) target = $region8
    $region5: #{tpu_custom_call.1} parent=1 // loop_body
      %s17 = ssub.s32 %s12, 1
      %s18 = ssub.s32 %s12, 2
      %s25 = sadd.s32 1, %s20
      %p26 = scmp.ge.s32.totalorder %s25, 1
      %s27 = scalar_select %p26, 0, %s25
      %s28 = sadd.s32 1, %s19
      %s29 = scalar_select %p26, %s28, %s19
      %p30 = scmp.ge.s32.totalorder %s29, 2
      %s31 = scalar_select %p30, 0, %s29
      %s32 = ssub.s32 %s19, %s31
      %s33 = ssub.s32 %s20, %s27
      %s34 = sor.u32 %s32, %s33
      %p35 = scmp.eq.s32.totalorder %s34, 0
      %s37 = sadd.s32 %s36, 1
      %s38 = scalar_select %p35, %s36, %s37
      %p41 = pneg %p35
      %p42 = scmp.eq.s32.totalorder %s12, 1
      %p43 = por %p41, %p42
      %p44 = scmp.ne.s32.totalorder %s36, %s39
      %p45 = scmp.eq.s32.totalorder %s12, 0
      %p46 = por %p44, %p45
      %p47 = scmp.ne.s32.totalorder %s36, %s39
      %p48 = scmp.eq.s32.totalorder %s17, 1
      %p49 = por %p47, %p48
      %p50 = scmp.ne.s32.totalorder %s39, %s40
      %p51 = scmp.eq.s32.totalorder %s17, 0
      %p52 = por %p50, %p51
      %p53 = scmp.ne.s32.totalorder %s39, %s40
      %p54 = scmp.eq.s32.totalorder %s18, 1
      %p55 = por %p53, %p54
      %p57 = scmp.ne.s32.totalorder %s40, %s56
      %p58 = scmp.eq.s32.totalorder %s18, 0
      %p59 = por %p57, %p58
      %s61 = sadd.s32 %s60, 1
      %p64 = scmp.eq.s32.totalorder %s12, 1
      %p65 = scmp.ne.s32.totalorder %s60, %s62
      %p66 = scmp.eq.s32.totalorder %s12, 0
      %p67 = por %p65, %p66
      %p68 = scmp.ne.s32.totalorder %s60, %s62
      %p69 = scmp.eq.s32.totalorder %s17, 1
      %p70 = por %p68, %p69
      %p71 = scmp.ne.s32.totalorder %s62, %s63
      %p72 = scmp.eq.s32.totalorder %s17, 0
      %p73 = por %p71, %p72
      %p74 = scmp.ne.s32.totalorder %s62, %s63
      %p75 = scmp.eq.s32.totalorder %s18, 1
      %p76 = por %p74, %p75
      %p78 = scmp.ne.s32.totalorder %s63, %s77
      %p79 = scmp.eq.s32.totalorder %s18, 0
      %p80 = por %p78, %p79
      %s82 = sadd.s32 %s81, 1
      %p85 = scmp.eq.s32.totalorder %s12, 1
      %p86 = scmp.ne.s32.totalorder %s81, %s83
      %p87 = scmp.eq.s32.totalorder %s12, 0
      %p88 = por %p86, %p87
      %p89 = scmp.ne.s32.totalorder %s81, %s83
      %p90 = scmp.eq.s32.totalorder %s17, 1
      %p91 = por %p89, %p90
      %p92 = scmp.ne.s32.totalorder %s83, %s84
      %p93 = scmp.eq.s32.totalorder %s17, 0
      %p94 = por %p92, %p93
      %p95 = scmp.ne.s32.totalorder %s83, %s84
      %p96 = scmp.eq.s32.totalorder %s18, 1
      %p97 = por %p95, %p96
      %p99 = scmp.ne.s32.totalorder %s84, %s98
      %p100 = scmp.eq.s32.totalorder %s18, 0
      %p101 = por %p99, %p100
      %s102 = ssub.s32 %s19, %s31
      %s103 = ssub.s32 %s20, %s27
      %s104 = sor.u32 %s102, %s103
      %p105 = scmp.eq.s32.totalorder %s104, 0
      %s107 = sadd.s32 %s106, 1
      %s108 = scalar_select %p105, %s106, %s107
      %p111 = pneg %p105
      %p112 = scmp.eq.s32.totalorder %s12, 1
      %p113 = por %p111, %p112
      %p114 = scmp.ne.s32.totalorder %s106, %s109
      %p115 = scmp.eq.s32.totalorder %s12, 0
      %p116 = por %p114, %p115
      %p117 = scmp.ne.s32.totalorder %s106, %s109
      %p118 = scmp.eq.s32.totalorder %s17, 1
      %p119 = por %p117, %p118
      %p120 = scmp.ne.s32.totalorder %s109, %s110
      %p121 = scmp.eq.s32.totalorder %s17, 0
      %p122 = por %p120, %p121
      %p123 = scmp.ne.s32.totalorder %s109, %s110
      %p124 = scmp.eq.s32.totalorder %s18, 1
      %p125 = por %p123, %p124
      %p127 = scmp.ne.s32.totalorder %s110, %s126
      %p128 = scmp.eq.s32.totalorder %s18, 0
      %p129 = por %p127, %p128
      %p130 = scmp.le.s32.totalorder 1, %s12
      %p131 = scmp.lt.s32.totalorder %s12, 3
      %p132 = pnand %p130, %p131
      %p133 = pneg %p132
      // Predicated region
      $region9: #{tpu_custom_call.1} parent=5 // pred_check
        _
      $region10: #{tpu_custom_call.1} parent=5 // pred_check_branch
        %135 = sbr.rel (%p132) target = $region12
      $region11: #{tpu_custom_call.1} parent=5 // pred_region
        %s136 = ssub.s32 %s12, 1
        // Predicated region
        $region13: #{tpu_custom_call.1} parent=11 // pred_check
          %p137 = pneg %p73
        $region14: #{tpu_custom_call.1} parent=11 // pred_check_branch
          %139 = sbr.rel (%p137) target = $region16
        $region15: #{tpu_custom_call.1} parent=11 // pred_region
          _
        $region16: #{tpu_custom_call.1} parent=11 // pred_fallthru
          _
        // Predicated region
        $region17: #{tpu_custom_call.1} parent=11 // pred_check
          %p140 = pneg %p94
        $region18: #{tpu_custom_call.1} parent=11 // pred_check_branch
          %142 = sbr.rel (%p140) target = $region20
        $region19: #{tpu_custom_call.1} parent=11 // pred_region
          _
        $region20: #{tpu_custom_call.1} parent=11 // pred_fallthru
          _
      $region12: #{tpu_custom_call.1} parent=5 // pred_fallthru
        _
      %p143 = scmp.lt.s32.totalorder %s12, 2
      // Predicated region
      $region21: #{tpu_custom_call.1} parent=5 // pred_check
        %p144 = pneg %p143
      $region22: #{tpu_custom_call.1} parent=5 // pred_check_branch
        %146 = sbr.rel (%p144) target = $region24
      $region23: #{tpu_custom_call.1} parent=5 // pred_region
        // Predicated region
        $region25: #{tpu_custom_call.1} parent=23 // pred_check
          %p147 = pneg %p46
        $region26: #{tpu_custom_call.1} parent=23 // pred_check_branch
          %149 = sbr.rel (%p147) target = $region28
        $region27: #{tpu_custom_call.1} parent=23 // pred_region
          %p150 = scmp.lt.s32.totalorder %s19, 1
          %s151 = scalar_select %p150, %s19, 1
          %p152 = scmp.lt.s32.totalorder %s20, 0
          %s153 = scalar_select %p152, %s20, 0
          %s154 = smul.addr %s151, 2
          %s155 = sadd.s32 %s153, %s154
          %s156 = smul.addr %s155, 8
          %s157 = scalar_lea.vmem %s0, %s156
        $region28: #{tpu_custom_call.1} parent=23 // pred_fallthru
          _
      $region24: #{tpu_custom_call.1} parent=5 // pred_fallthru
        _
      %p158 = scmp.le.s32.totalorder 1, %s12
      %p159 = scmp.lt.s32.totalorder %s12, 3
      %p160 = pnand %p158, %p159
      %p161 = pneg %p160
      // Predicated region
      $region29: #{tpu_custom_call.1} parent=5 // pred_check
        _
      $region30: #{tpu_custom_call.1} parent=5 // pred_check_branch
        %163 = sbr.rel (%p160) target = $region32
      $region31: #{tpu_custom_call.1} parent=5 // pred_region
        %s164 = ssub.s32 %s12, 1
        %p165 = scmp.lt.s32.totalorder %s21, 1
        %s166 = scalar_select %p165, %s21, 1
        %p167 = scmp.lt.s32.totalorder %s22, 0
        %s168 = scalar_select %p167, %s22, 0
        %s169 = smul.addr %s166, 2
        %s170 = sadd.s32 %s168, %s169
        %s171 = smul.addr %s170, 8
        %s172 = scalar_lea.vmem %s0, %s171
        %p173 = pneg %p52
        %p174 = pneg %p49
        %p175 = pneg %p73
        %p176 = pneg %p70
        %p177 = pneg %p94
        %p178 = pneg %p91
        %p179 = pneg %p122
        %p180 = pneg %p119
        %s181 = sand.u32 %s109, 1
        %s182 = scalar_lea.sflag [#allocation3], %s181
        %s183 = sand.u32 %s109, 1
        %s184 = smul.addr %s183, 32
        %s185 = scalar_lea.vmem [#allocation2], %s184
        %p186 = scmp.lt.s32.totalorder %s21, 1
        %s187 = scalar_select %p186, %s21, 1
        %p188 = scmp.lt.s32.totalorder %s22, 0
        %s189 = scalar_select %p188, %s22, 0
        %s190 = smul.addr %s187, 2
        %s191 = sadd.s32 %s189, %s190
        %s192 = smul.addr %s191, 8
        %s193 = scalar_lea.vmem %s0, %s192
        %v194 = vld [vmem:[%s1] sm:$0xff]
        %v195 = vld [vmem:[%s1 + $0x8] sm:$0xff]
        %v196 = vld [vmem:[%s1 + $0x10] sm:$0xff]
        %v197 = vld [vmem:[%s1 + $0x18] sm:$0xff]
        %v198 = vld [vmem:[%s193] sm:$0xff]
        %v199 = vld [vmem:[%s193 + $0x8] sm:$0xff]
        %v200 = vld [vmem:[%s2] sm:$0xff]
        %v201 = vld [vmem:[%s2 + $0x8] sm:$0xff]
        %v202 = vld [vmem:[%s2 + $0x10] sm:$0xff]
        %v203 = vld [vmem:[%s2 + $0x18] sm:$0xff]
        %205 = vset.pattern.permute.xlu0 0
        %206 = vperm.xlu0 %205, %v200
        %v207 = vpop.permute.xlu0 %206
        %210 = vset.pattern.permute.xlu0 0
        %211 = vperm.xlu0 %210, %v201
        %v212 = vpop.permute.xlu0 %211
        %215 = vset.pattern.permute.xlu0 0
        %216 = vperm.xlu0 %215, %v202
        %v217 = vpop.permute.xlu0 %216
        %220 = vset.pattern.permute.xlu0 0
        %221 = vperm.xlu0 %220, %v203
        %v222 = vpop.permute.xlu0 %221
        %vm224 = vcmask 130048
        %v226 = vsel %vm224, %v194, 0
        %v229 = vsel %vm224, %v195, 0
        %v232 = vsel %vm224, %v196, 0
        %v235 = vsel %vm224, %v197, 0
        %237 = vmatprep.subr.mxu0 0.0
        %238 = vmatpush1.msra.mxu0 %v198
        %239 = vmatprep.subr.mxu0 0.0
        %240 = vmatpush1.msra.mxu0 %v199
        %241 = vmatprep.subr.mxu0 0.0
        %242 = vmatpush1.msra.mxu0 0.0
        %243 = vmatprep.subr.mxu0 0.0
        %244 = vmatpush1.msra.mxu0 0.0
        %245 = vmatprep.subr.mxu0 0.0
        %246 = vmatpush1.msra.mxu0 0.0
        %247 = vmatprep.subr.mxu0 0.0
        %248 = vmatpush1.msra.mxu0 0.0
        %249 = vmatprep.subr.mxu0 0.0
        %250 = vmatpush1.msra.mxu0 0.0
        %251 = vmatprep.subr.mxu0 0.0
        %252 = vmatpush1.msra.mxu0 0.0
        %253 = vmatprep.subr.mxu0 0.0
        %254 = vmatpush1.msra.mxu0 0.0
        %255 = vmatprep.subr.mxu0 0.0
        %256 = vmatpush1.msra.mxu0 0.0
        %257 = vmatprep.subr.mxu0 0.0
        %258 = vmatpush1.msra.mxu0 0.0
        %259 = vmatprep.subr.mxu0 0.0
        %260 = vmatpush1.msra.mxu0 0.0
        %261 = vmatprep.subr.mxu0 0.0
        %262 = vmatpush1.msra.mxu0 0.0
        %263 = vmatprep.subr.mxu0 0.0
        %264 = vmatpush1.msra.mxu0 0.0
        %265 = vmatprep.subr.mxu0 0.0
        %266 = vmatpush1.msra.mxu0 0.0
        %267 = vmatprep.subr.mxu0 0.0
        %268 = vmatpush1.msra.mxu0 0.0
        %269 = vmatprep.subr.mxu0 0.0
        %270 = vmatpush1.msra.mxu0 0.0
        %271 = vmatprep.subr.mxu0 0.0
        %272 = vmatpush1.msra.mxu0 0.0
        %273 = vmatprep.subr.mxu0 0.0
        %274 = vmatpush1.msra.mxu0 0.0
        %275 = vmatprep.subr.mxu0 0.0
        %276 = vmatpush1.msra.mxu0 0.0
        %277 = vmatprep.subr.mxu0 0.0
        %278 = vmatpush1.msra.mxu0 0.0
        %279 = vmatprep.subr.mxu0 0.0
        %280 = vmatpush1.msra.mxu0 0.0
        %281 = vmatprep.subr.mxu0 0.0
        %282 = vmatpush1.msra.mxu0 0.0
        %283 = vmatprep.subr.mxu0 0.0
        %284 = vmatpush1.msra.mxu0 0.0
        %285 = vmatprep.subr.mxu0 0.0
        %286 = vmatpush1.msra.mxu0 0.0
        %287 = vmatprep.subr.mxu0 0.0
        %288 = vmatpush1.msra.mxu0 0.0
        %289 = vmatprep.subr.mxu0 0.0
        %290 = vmatpush1.msra.mxu0 0.0
        %291 = vmatprep.subr.mxu0 0.0
        %292 = vmatpush1.msra.mxu0 0.0
        %293 = vmatprep.subr.mxu0 0.0
        %294 = vmatpush1.msra.mxu0 0.0
        %295 = vmatprep.subr.mxu0 0.0
        %296 = vmatpush1.msra.mxu0 0.0
        %297 = vmatprep.subr.mxu0 0.0
        %298 = vmatpush1.msra.mxu0 0.0
        %299 = vmatprep.subr.mxu0 0.0
        %300 = vmatpush1.msra.mxu0 0.0
        %301 = vmatprep.mubr.f32.mxu0 0.0
        %302 = vmatmul.mubr.f32.gmra.mrb[0].mxu0 %v226
        %v303 = vpop.f32.mrb[0].mxu0
        %v304 = vadd.f32 %v207, %v303
        %v305 = vpop.f32.mrb[0].mxu0
        %306 = vmatprep.mubr.f32.mxu0 0.0
        %307 = vmatmul.mubr.f32.gmra.mrb[0].mxu0 %v229
        %v308 = vpop.f32.mrb[0].mxu0
        %v309 = vadd.f32 %v212, %v308
        %v310 = vpop.f32.mrb[0].mxu0
        %311 = vmatprep.mubr.f32.mxu0 0.0
        %312 = vmatmul.mubr.f32.gmra.mrb[0].mxu0 %v232
        %v313 = vpop.f32.mrb[0].mxu0
        %v314 = vadd.f32 %v217, %v313
        %v315 = vpop.f32.mrb[0].mxu0
        %316 = vmatprep.mubr.f32.mxu0 0.0
        %317 = vmatmul.mubr.f32.gmra.mrb[0].mxu0 %v235
        %v318 = vpop.f32.mrb[0].mxu0
        %v319 = vadd.f32 %v222, %v318
        %v320 = vpop.f32.mrb[0].mxu0
        %321 = vdwg.mxu0
        %vm322 = vcmask 523264
        %323 = vst.msk [vmem:[%s185] sm:$0xff] %vm322, %v304
        %324 = vst.msk [vmem:[%s185 + $0x8] sm:$0xff] %vm322, %v309
        %325 = vst.msk [vmem:[%s185 + $0x10] sm:$0xff] %vm322, %v314
        %326 = vst.msk [vmem:[%s185 + $0x18] sm:$0xff] %vm322, %v319
        %s327 = sand.u32 %s109, 1
        %s328 = scalar_lea.sflag [#allocation3], %s327
        %s329 = sand.u32 %s109, 1
        %s330 = smul.addr %s329, 32
        %s331 = scalar_lea.vmem [#allocation2], %s330
        // Predicated region
        $region33: #{tpu_custom_call.1} parent=31 // pred_check
          %p332 = pneg %p119
        $region34: #{tpu_custom_call.1} parent=31 // pred_check_branch
          %334 = sbr.rel (%p332) target = $region36
        $region35: #{tpu_custom_call.1} parent=31 // pred_region
          %s336 = ssub.s32 512, 512
          %337 = vsyncadd %s328, %s336
          %s338 = smul.addr %s21, 4
          %s339 = sadd.s32 %s22, %s338
          %s340 = smul.addr %s339, 128
          %s341 = scalar_lea.hbm %s3, %s340
          %s342 = sshll.u32 %s331, 4
          %s343 = int_to_ptr.vmem [resolvable:$true] %s342
          %348 = dma.vmem_to_hbm [thread:$0]  %s343, 512, %s341, %s328, 128, 128, 8
        $region36: #{tpu_custom_call.1} parent=31 // pred_fallthru
          _
      $region32: #{tpu_custom_call.1} parent=5 // pred_fallthru
        _
      %p349 = scmp.le.s32.totalorder 2, %s12
      // Predicated region
      $region37: #{tpu_custom_call.1} parent=5 // pred_check
        %p350 = pneg %p349
      $region38: #{tpu_custom_call.1} parent=5 // pred_check_branch
        %352 = sbr.rel (%p350) target = $region40
      $region39: #{tpu_custom_call.1} parent=5 // pred_region
        %s353 = ssub.s32 %s12, 2
        // Predicated region
        $region41: #{tpu_custom_call.1} parent=39 // pred_check
          %p354 = pneg %p125
        $region42: #{tpu_custom_call.1} parent=39 // pred_check_branch
          %356 = sbr.rel (%p354) target = $region44
        $region43: #{tpu_custom_call.1} parent=39 // pred_region
          %s357 = sand.u32 %s110, 1
          %s358 = scalar_lea.sflag [#allocation3], %s357
          %s359 = sand.u32 %s110, 1
          %s360 = smul.addr %s359, 32
          %s361 = scalar_lea.vmem [#allocation2], %s360
          %362 = dma.done %s358, 512
        $region44: #{tpu_custom_call.1} parent=39 // pred_fallthru
          _
      $region40: #{tpu_custom_call.1} parent=5 // pred_fallthru
        _
    $region6: #{tpu_custom_call.1} parent=1 // loop_footer
      %s16 = sadd.s32 1, %s12
    $region7: #{tpu_custom_call.1} parent=1 // loop_footer_branch
      %11 = sbr.rel target = $region3
    $region8: #{tpu_custom_call.1} parent=1 // loop_exit
      _
    %363 = vsyncpa [#allocation3], 1
    %s364 = scalar_lea.sflag [#allocation3], 1
    %365 = vsyncpa %s364, 1

</llo_original>
